<compile_context>
chip_gen: v7x
topology: tpu7x:2x2x1
jax: 0.10.0
libtpu: 0.0.40
codegen_flags: <defaults>
</compile_context>

<pallas_src>
import functools

import numpy as np
import jax
import jax.numpy as jnp
from jax.experimental import pallas as pl
from jax.experimental.pallas import tpu as pltpu

LANE = 128
MiB = 1024 * 1024


def _round_up(x, m):
    return ((x + m - 1) // m) * m


# --------------------------------------------------------------------------- #
# Chip-aware VMEM budget + pl.Buffered(1) support probe (both cached).
# --------------------------------------------------------------------------- #
_VMEM_BUDGET = None
_BUFFERED_OK = None


def _vmem_budget_bytes():
    """Per-core VMEM we allow the fused kernel to use (chip-aware clamp)."""
    global _VMEM_BUDGET
    if _VMEM_BUDGET is None:
        try:
            cap = int(pltpu.get_tpu_info().vmem_capacity_bytes)
        except Exception:
            cap = 64 * MiB  # conservative default == v7x per-TensorCore VMEM
        # ~56 MiB on v7x (64 MiB/TC), ~108 MiB on v5e/v6e (128 MiB VMEM).
        _VMEM_BUDGET = int(max(32 * MiB, min(cap - 8 * MiB, 108 * MiB)))
    return _VMEM_BUDGET


def _weights_single_buffered():
    """True iff this JAX build accepts pipeline_mode=pl.Buffered(1) on in_specs."""
    global _BUFFERED_OK
    if _BUFFERED_OK is not None:
        return _BUFFERED_OK
    try:
        def probe_kernel(x_ref, w_ref, o_ref):
            o_ref[...] = x_ref[...] + w_ref[...]

        probe = pl.pallas_call(
            probe_kernel,
            out_shape=jax.ShapeDtypeStruct((16, 128), jnp.float32),
            grid=(2,),
            in_specs=[
                pl.BlockSpec((8, 128), lambda i: (i, 0)),
                pl.BlockSpec((8, 128), lambda i: (0, 0),
                             pipeline_mode=pl.Buffered(1)),
            ],
            out_specs=pl.BlockSpec((8, 128), lambda i: (i, 0)),
            compiler_params=pltpu.CompilerParams(
                dimension_semantics=("parallel",)),
        )
        jax.block_until_ready(
            probe(jnp.zeros((16, 128), jnp.float32),
                  jnp.ones((8, 128), jnp.float32)))
        _BUFFERED_OK = True
    except Exception:
        _BUFFERED_OK = False
    return _BUFFERED_OK


# --------------------------------------------------------------------------- #
# Parameter construction (matches nn.Linear semantics; weights stored (in, out)).
# --------------------------------------------------------------------------- #
def init_linnet_params(key, n_in, n_dep, n_hid, n_out, dtype=jnp.float32):
    def make_linear(k, fan_in, fan_out):
        kw, kb = jax.random.split(k)
        bound = 1.0 / np.sqrt(fan_in)
        w = jax.random.uniform(kw, (fan_in, fan_out), dtype, -bound, bound)
        b = jax.random.uniform(kb, (1, fan_out), dtype, -bound, bound)
        return w, b

    keys = jax.random.split(key, n_dep + 2)
    layers = [make_linear(keys[0], n_in, n_hid)]
    layers += [make_linear(keys[1 + i], n_hid, n_hid) for i in range(n_dep)]
    layers += [make_linear(keys[n_dep + 1], n_hid, n_out)]
    return layers  # list of (w, b) with logical shapes


def pack_params(layers, compute_dtype=jnp.bfloat16):
    """Zero-pad feature dims to lane multiples (128).  Weights go to the MXU compute
    dtype, biases stay f32 (f32 epilogue).  The LAST layer's output dim is left
    unpadded so the kernel writes the logical (m, n_out) result directly (no wrapper
    slice / 8x-inflated output writes).  Zero padding is exact: padded hidden units
    are ReLU(0 + 0) = 0 and contribute nothing downstream."""
    packed = []
    n_layers = len(layers)
    for i, (w, b) in enumerate(layers):
        kin, kout = w.shape
        kin_p = _round_up(kin, LANE)
        kout_p = kout if i == n_layers - 1 else _round_up(kout, LANE)
        wp = jnp.pad(w, ((0, kin_p - kin), (0, kout_p - kout))).astype(compute_dtype)
        bp = jnp.pad(b, ((0, 0), (0, kout_p - kout))).astype(jnp.float32)
        packed.append((wp, bp))
    return packed


# --------------------------------------------------------------------------- #
# Fused all-resident kernel (primary path).
# refs = (x_ref, w0, b0, ..., w_{L-1}, b_{L-1}, o_ref)
# --------------------------------------------------------------------------- #
def _fused_mlp_kernel(*refs, n_layers):
    x_ref, o_ref = refs[0], refs[-1]
    # x may arrive as f32 (zero-copy fast path) or bf16 (padded path); MXU runs bf16.
    h = x_ref[...].astype(jnp.bfloat16)
    for layer in range(n_layers):
        w_ref = refs[1 + 2 * layer]                       # (K_pad, N_pad) bf16, resident
        b_ref = refs[2 + 2 * layer]                       # (1, N_pad)     f32
        y = jnp.dot(h, w_ref[...], preferred_element_type=jnp.float32) + b_ref[...]
        if layer < n_layers - 1:
            h = jnp.maximum(y, 0.0).astype(jnp.bfloat16)  # ReLU in f32, bf16 to next MXU
        else:
            o_ref[...] = y.astype(o_ref.dtype)            # final layer: no ReLU


def _fused_mlp_pallas(x_in, packed_params, tm, out_dtype, single_buf, vmem_limit):
    m_pad, k_pad = x_in.shape
    n_layers = len(packed_params)
    n_out = packed_params[-1][0].shape[1]

    # Constant index maps keep params VMEM-resident across batch tiles; Buffered(1)
    # (when supported) stops Mosaic from allocating a useless second buffer for them.
    w_mode = dict(pipeline_mode=pl.Buffered(1)) if single_buf else {}

    inputs = [x_in]
    # Note: if xprof ever shows exposed DMA on the x stream (v7x), deepen this one spec
    # to pl.Buffered(3); the weight specs stay single-buffered.
    in_specs = [pl.BlockSpec((tm, k_pad), lambda i: (i, 0))]
    for w, b in packed_params:
        kin_p, kout_p = w.shape
        inputs += [w, b]
        in_specs += [
            pl.BlockSpec((kin_p, kout_p), lambda i: (0, 0), **w_mode),
            pl.BlockSpec((1, kout_p), lambda i: (0, 0), **w_mode),
        ]

    return pl.pallas_call(
        functools.partial(_fused_mlp_kernel, n_layers=n_layers),
        out_shape=jax.ShapeDtypeStruct((m_pad, n_out), out_dtype),
        grid=(m_pad // tm,),
        in_specs=in_specs,
        out_specs=pl.BlockSpec((tm, n_out), lambda i: (i, 0)),
        compiler_params=pltpu.CompilerParams(
            dimension_semantics=("parallel",),   # megacore sharding on v7x
            vmem_limit_bytes=int(vmem_limit),
        ),
    )(*inputs)


# --------------------------------------------------------------------------- #
# Fallback: per-layer tiled matmul + bias (+ReLU) kernels for models whose packed
# weights exceed the per-core VMEM residency budget.
# --------------------------------------------------------------------------- #
def _linear_kernel(x_ref, w_ref, b_ref, o_ref, acc_ref, *, relu):
    @pl.when(pl.program_id(2) == 0)
    def _():
        acc_ref[...] = jnp.zeros_like(acc_ref)

    acc_ref[...] += jnp.dot(x_ref[...].astype(jnp.bfloat16), w_ref[...],
                            preferred_element_type=jnp.float32)

    @pl.when(pl.program_id(2) == pl.num_programs(2) - 1)
    def _():
        y = acc_ref[...] + b_ref[...]
        if relu:
            y = jnp.maximum(y, 0.0)
        o_ref[...] = y.astype(o_ref.dtype)


def _pick_div_tile(dim, cands):
    for c in cands:
        if dim % c == 0:
            return c
    return dim


def _linear_pallas(h, w, b, *, relu, out_dtype, vmem_limit):
    M, K = h.shape
    N = w.shape[1]
    tm = _pick_div_tile(M, (256, 128, 64, 32, 16, 8))
    tk = _pick_div_tile(K, (512, 256, 128))
    tn = N if N % 128 else _pick_div_tile(N, (512, 256, 128))
    return pl.pallas_call(
        functools.partial(_linear_kernel, relu=relu),
        out_shape=jax.ShapeDtypeStruct((M, N), out_dtype),
        grid=(M // tm, N // tn, K // tk),
        in_specs=[
            pl.BlockSpec((tm, tk), lambda i, j, k: (i, k)),
            pl.BlockSpec((tk, tn), lambda i, j, k: (k, j)),
            pl.BlockSpec((1, tn), lambda i, j, k: (0, j)),
        ],
        out_specs=pl.BlockSpec((tm, tn), lambda i, j, k: (i, j)),
        scratch_shapes=[pltpu.VMEM((tm, tn), jnp.float32)],
        compiler_params=pltpu.CompilerParams(
            dimension_semantics=("parallel", "parallel", "arbitrary"),
            vmem_limit_bytes=int(vmem_limit),
        ),
    )(h, w, b)


def _mlp_layered(x, packed_params, out_dtype, budget):
    """Per-layer fallback: activations stream HBM<->VMEM in bf16 between layers."""
    m, k = x.shape
    k_pad = packed_params[0][0].shape[0]
    m_pad = _round_up(m, 16) if m <= 256 else _round_up(m, 256)
    h = x
    if m_pad != m or k_pad != k:
        h = jnp.pad(h, ((0, m_pad - m), (0, k_pad - k)))
    vmem_limit = min(budget, 64 * MiB)
    n_layers = len(packed_params)
    for i, (w, b) in enumerate(packed_params):
        last = i == n_layers - 1
        h = _linear_pallas(h, w, b, relu=not last,
                           out_dtype=out_dtype if last else jnp.bfloat16,
                           vmem_limit=vmem_limit)
    return h if m_pad == m else h[:m]


# --------------------------------------------------------------------------- #
# Forward pass wrapper.
# --------------------------------------------------------------------------- #
def _pick_batch_tile(m, max_tm):
    if m <= 128:
        tm = _round_up(max(m, 8), 16)
    else:
        # >= 2 batch tiles so mid-size batches still span both v7x TensorCores.
        tm = _round_up((m + 1) // 2, 16)
    tm = min(tm, max_tm)
    return tm, _round_up(m, tm)


@functools.partial(jax.jit, static_argnums=(2, 3, 4))
def _linnet_forward_jit(packed_params, x, out_dtype, single_buf, budget):
    m, k = x.shape
    k_pad = packed_params[0][0].shape[0]
    n_out = packed_params[-1][0].shape[1]
    h_max = max(max(w.shape) for w, _ in packed_params)
    out_isz = np.dtype(out_dtype).itemsize

    buffers = 1 if single_buf else 2   # Mosaic double-buffers specs by default
    weight_bytes = buffers * sum(
        w.size * w.dtype.itemsize + b.size * b.dtype.itemsize
        for w, b in packed_params)

    def fused_footprint(tm):
        io = 2 * tm * k_pad * 4 + 2 * tm * n_out * out_isz   # double-buffered x / out
        act = 3 * tm * h_max * 4                              # f32 activation headroom
        return weight_bytes + io + act

    # Largest batch tile whose all-resident footprint fits the chip budget
    # (512 pays off on v5e/v6e's larger VMEM / small models; 256-or-less on v7x).
    max_tm = next((c for c in (512, 256, 128, 64, 32, 16)
                   if fused_footprint(c) <= budget), None)

    if max_tm is None:
        # Weights cannot all stay VMEM-resident -> per-layer tiled fallback.
        return _mlp_layered(x, packed_params, out_dtype, budget)

    tm, m_pad = _pick_batch_tile(m, max_tm)
    if m_pad != m or k_pad != k:
        # One fused pad+cast pass, only when shapes actually need padding.
        x_in = jnp.pad(x, ((0, m_pad - m), (0, k_pad - k))).astype(jnp.bfloat16)
    else:
        x_in = x   # zero-copy fast path: kernel casts each f32 tile to bf16 in VMEM

    out = _fused_mlp_pallas(x_in, packed_params, tm, out_dtype, single_buf, budget)
    return out if m_pad == m else out[:m]


def linnet_forward(packed_params, x, out_dtype=jnp.float32):
    """LinNet.forward semantics: Linear->ReLU, n_dep x [Linear->ReLU], Linear.
    Matmuls run in bf16 on the MXU with f32 accumulation and f32 epilogue."""
    return _linnet_forward_jit(packed_params, x, out_dtype,
                               _weights_single_buffered(), _vmem_budget_bytes())


# --------------------------------------------------------------------------- #
# Self-test
# --------------------------------------------------------------------------- #
if __name__ == "__main__":
    root = jax.random.PRNGKey(0)
    k_params, k_x, k_params2, k_x2 = jax.random.split(root, 4)

    def reference(layers, x, bf16_matmul):
        h = x
        for i, (w, b) in enumerate(layers):
            if bf16_matmul:
                y = jnp.dot(h.astype(jnp.bfloat16), w.astype(jnp.bfloat16),
                            preferred_element_type=jnp.float32) + b
            else:
                y = h @ w + b
            h = jnp.maximum(y, 0.0) if i < len(layers) - 1 else y
        return h

    # --- Test 1: small model, padded path (n_in=32 -> 128 lanes, batch 8 -> 16) -----
    batch, n_in, n_dep, n_hid, n_out = 8, 32, 2, 64, 16
    layers = init_linnet_params(k_params, n_in, n_dep, n_hid, n_out)
    packed = pack_params(layers)
    x = jax.random.normal(k_x, (batch, n_in), dtype=jnp.float32)

    out = jax.block_until_ready(linnet_forward(packed, x))
    assert out.shape == (batch, n_out)
    assert jnp.allclose(out, reference(layers, x, True), atol=1e-2, rtol=1e-2), \
        "mismatch vs bf16-matched reference"
    assert jnp.allclose(out, reference(layers, x, False), atol=5e-2, rtol=5e-2), \
        "mismatch vs f32 reference"

    # --- Test 2: lane-aligned shapes -> zero-copy input path + 2-tile batch grid ----
    batch2, n_in2, n_dep2, n_hid2, n_out2 = 256, 128, 1, 256, 128
    layers2 = init_linnet_params(k_params2, n_in2, n_dep2, n_hid2, n_out2)
    packed2 = pack_params(layers2)
    x2 = jax.random.normal(k_x2, (batch2, n_in2), dtype=jnp.float32)

    out2 = jax.block_until_ready(linnet_forward(packed2, x2))
    assert out2.shape == (batch2, n_out2)
    assert jnp.allclose(out2, reference(layers2, x2, True), atol=2e-2, rtol=2e-2), \
        "mismatch vs bf16-matched reference (aligned path)"

    # --- Test 3: exercise the large-model per-layer fallback path explicitly --------
    out3 = jax.block_until_ready(
        _mlp_layered(x, packed, jnp.float32, _vmem_budget_bytes()))
    assert out3.shape == (batch, n_out)
    assert jnp.allclose(out3, reference(layers, x, True), atol=1e-2, rtol=1e-2), \
        "mismatch vs bf16-matched reference (fallback path)"

    print("KERNEL_OK")
</pallas_src>

<mosaic_0001>
module attributes {stable_mosaic.version = 11 : i64} {
  func.func @probe_kernel(%arg0: i32, %arg1: memref<8x128xf32, #tpu.memory_space<vmem>>, %arg2: memref<8x128xf32, #tpu.memory_space<vmem>>, %arg3: memref<8x128xf32, #tpu.memory_space<vmem>>) attributes {dimension_semantics = [#tpu.dimension_semantics<parallel>], iteration_bounds = array<i64: 2>, scalar_prefetch = 0 : i64, scratch_operands = 0 : i64, tpu.core_type = #tpu.core_type<tc>, window_params = [{transform_indices = @transform_0, window_bounds = array<i64: 8, 128>}, {pipeline_mode = #tpu.pipeline_mode<synchronous>, transform_indices = @transform_1, window_bounds = array<i64: 8, 128>}, {transform_indices = @transform_2, window_bounds = array<i64: 8, 128>}]} {
    %c0 = arith.constant 0 : index
    %c0_0 = arith.constant 0 : index
    %0 = vector.load %arg1[%c0, %c0_0] : memref<8x128xf32, #tpu.memory_space<vmem>>, vector<8x128xf32>
    %c0_1 = arith.constant 0 : index
    %c0_2 = arith.constant 0 : index
    %1 = vector.load %arg2[%c0_1, %c0_2] : memref<8x128xf32, #tpu.memory_space<vmem>>, vector<8x128xf32>
    %2 = arith.addf %0, %1 : vector<8x128xf32>
    %c0_3 = arith.constant 0 : index
    %c0_4 = arith.constant 0 : index
    %3 = vector.load %arg3[%c0_3, %c0_4] : memref<8x128xf32, #tpu.memory_space<vmem>>, vector<8x128xf32>
    tpu.vector_store %arg3[%c0_3, %c0_4], %2 {strides = array<i32>} : memref<8x128xf32, #tpu.memory_space<vmem>>, vector<8x128xf32>,
    return
  }
  func.func @transform_0(%arg0: i32) -> (i32, i32) {
    %c0_i32 = arith.constant 0 : i32
    %c0_i32_0 = arith.constant 0 : i32
    return %arg0, %c0_i32 : i32, i32
  }
  func.func @transform_1(%arg0: i32) -> (i32, i32) {
    %c0_i32 = arith.constant 0 : i32
    %c0_i32_0 = arith.constant 0 : i32
    %c0_i32_1 = arith.constant 0 : i32
    return %c0_i32, %c0_i32_0 : i32, i32
  }
  func.func @transform_2(%arg0: i32) -> (i32, i32) {
    %c0_i32 = arith.constant 0 : i32
    %c0_i32_0 = arith.constant 0 : i32
    return %arg0, %c0_i32 : i32, i32
  }
}

module attributes {stable_mosaic.version = 11 : i64} {
  func.func @_fused_mlp_kernel(%arg0: i32, %arg1: memref<16x128xbf16, #tpu.memory_space<vmem>>, %arg2: memref<128x128xbf16, #tpu.memory_space<vmem>>, %arg3: memref<1x128xf32, #tpu.memory_space<vmem>>, %arg4: memref<128x128xbf16, #tpu.memory_space<vmem>>, %arg5: memref<1x128xf32, #tpu.memory_space<vmem>>, %arg6: memref<128x128xbf16, #tpu.memory_space<vmem>>, %arg7: memref<1x128xf32, #tpu.memory_space<vmem>>, %arg8: memref<128x16xbf16, #tpu.memory_space<vmem>>, %arg9: memref<1x16xf32, #tpu.memory_space<vmem>>, %arg10: memref<16x16xf32, #tpu.memory_space<vmem>>) attributes {dimension_semantics = [#tpu.dimension_semantics<parallel>], iteration_bounds = array<i64: 1>, scalar_prefetch = 0 : i64, scratch_operands = 0 : i64, tpu.core_type = #tpu.core_type<tc>, window_params = [{transform_indices = @transform_0, window_bounds = array<i64: 16, 128>}, {pipeline_mode = #tpu.pipeline_mode<synchronous>, transform_indices = @transform_1, window_bounds = array<i64: 128, 128>}, {pipeline_mode = #tpu.pipeline_mode<synchronous>, transform_indices = @transform_2, window_bounds = array<i64: 1, 128>}, {pipeline_mode = #tpu.pipeline_mode<synchronous>, transform_indices = @transform_3, window_bounds = array<i64: 128, 128>}, {pipeline_mode = #tpu.pipeline_mode<synchronous>, transform_indices = @transform_4, window_bounds = array<i64: 1, 128>}, {pipeline_mode = #tpu.pipeline_mode<synchronous>, transform_indices = @transform_5, window_bounds = array<i64: 128, 128>}, {pipeline_mode = #tpu.pipeline_mode<synchronous>, transform_indices = @transform_6, window_bounds = array<i64: 1, 128>}, {pipeline_mode = #tpu.pipeline_mode<synchronous>, transform_indices = @transform_7, window_bounds = array<i64: 128, 16>}, {pipeline_mode = #tpu.pipeline_mode<synchronous>, transform_indices = @transform_8, window_bounds = array<i64: 1, 16>}, {transform_indices = @transform_9, window_bounds = array<i64: 16, 16>}]} {
    %c0 = arith.constant 0 : index
    %c0_0 = arith.constant 0 : index
    %0 = vector.load %arg1[%c0, %c0_0] : memref<16x128xbf16, #tpu.memory_space<vmem>>, vector<16x128xbf16>
    %c0_1 = arith.constant 0 : index
    %c0_2 = arith.constant 0 : index
    %1 = vector.load %arg2[%c0_1, %c0_2] : memref<128x128xbf16, #tpu.memory_space<vmem>>, vector<128x128xbf16>
    %cst = arith.constant dense<0.000000e+00> : vector<16x128xf32>
    %2 = tpu.matmul %0, %1, %cst {dimension_numbers = #tpu.dot_dimension_numbers<[1], [0], [0], [1], [0, 0, 1, 1], [], []>} : vector<16x128xbf16>, vector<128x128xbf16>, vector<16x128xf32> -> vector<16x128xf32>
    %c0_3 = arith.constant 0 : index
    %c0_4 = arith.constant 0 : index
    %3 = vector.load %arg3[%c0_3, %c0_4] : memref<1x128xf32, #tpu.memory_space<vmem>>, vector<1x128xf32>
    %4 = vector.broadcast %3 : vector<1x128xf32> to vector<16x128xf32>
    %5 = arith.addf %2, %4 : vector<16x128xf32>
    %cst_5 = arith.constant 0.000000e+00 : f32
    %6 = vector.broadcast %cst_5 : f32 to vector<16x128xf32>
    %7 = arith.maximumf %5, %6 : vector<16x128xf32>
    %8 = arith.truncf %7 : vector<16x128xf32> to vector<16x128xbf16>
    %c0_6 = arith.constant 0 : index
    %c0_7 = arith.constant 0 : index
    %9 = vector.load %arg4[%c0_6, %c0_7] : memref<128x128xbf16, #tpu.memory_space<vmem>>, vector<128x128xbf16>
    %cst_8 = arith.constant dense<0.000000e+00> : vector<16x128xf32>
    %10 = tpu.matmul %8, %9, %cst_8 {dimension_numbers = #tpu.dot_dimension_numbers<[1], [0], [0], [1], [0, 0, 1, 1], [], []>} : vector<16x128xbf16>, vector<128x128xbf16>, vector<16x128xf32> -> vector<16x128xf32>
    %c0_9 = arith.constant 0 : index
    %c0_10 = arith.constant 0 : index
    %11 = vector.load %arg5[%c0_9, %c0_10] : memref<1x128xf32, #tpu.memory_space<vmem>>, vector<1x128xf32>
    %12 = vector.broadcast %11 : vector<1x128xf32> to vector<16x128xf32>
    %13 = arith.addf %10, %12 : vector<16x128xf32>
    %cst_11 = arith.constant 0.000000e+00 : f32
    %14 = vector.broadcast %cst_11 : f32 to vector<16x128xf32>
    %15 = arith.maximumf %13, %14 : vector<16x128xf32>
    %16 = arith.truncf %15 : vector<16x128xf32> to vector<16x128xbf16>
    %c0_12 = arith.constant 0 : index
    %c0_13 = arith.constant 0 : index
    %17 = vector.load %arg6[%c0_12, %c0_13] : memref<128x128xbf16, #tpu.memory_space<vmem>>, vector<128x128xbf16>
    %cst_14 = arith.constant dense<0.000000e+00> : vector<16x128xf32>
    %18 = tpu.matmul %16, %17, %cst_14 {dimension_numbers = #tpu.dot_dimension_numbers<[1], [0], [0], [1], [0, 0, 1, 1], [], []>} : vector<16x128xbf16>, vector<128x128xbf16>, vector<16x128xf32> -> vector<16x128xf32>
    %c0_15 = arith.constant 0 : index
    %c0_16 = arith.constant 0 : index
    %19 = vector.load %arg7[%c0_15, %c0_16] : memref<1x128xf32, #tpu.memory_space<vmem>>, vector<1x128xf32>
    %20 = vector.broadcast %19 : vector<1x128xf32> to vector<16x128xf32>
    %21 = arith.addf %18, %20 : vector<16x128xf32>
    %cst_17 = arith.constant 0.000000e+00 : f32
    %22 = vector.broadcast %cst_17 : f32 to vector<16x128xf32>
    %23 = arith.maximumf %21, %22 : vector<16x128xf32>
    %24 = arith.truncf %23 : vector<16x128xf32> to vector<16x128xbf16>
    %c0_18 = arith.constant 0 : index
    %c0_19 = arith.constant 0 : index
    %25 = vector.load %arg8[%c0_18, %c0_19] : memref<128x16xbf16, #tpu.memory_space<vmem>>, vector<128x16xbf16>
    %cst_20 = arith.constant dense<0.000000e+00> : vector<16x16xf32>
    %26 = tpu.matmul %24, %25, %cst_20 {dimension_numbers = #tpu.dot_dimension_numbers<[1], [0], [0], [1], [0, 0, 1, 1], [], []>} : vector<16x128xbf16>, vector<128x16xbf16>, vector<16x16xf32> -> vector<16x16xf32>
    %c0_21 = arith.constant 0 : index
    %c0_22 = arith.constant 0 : index
    %27 = vector.load %arg9[%c0_21, %c0_22] : memref<1x16xf32, #tpu.memory_space<vmem>>, vector<1x16xf32>
    %28 = vector.broadcast %27 : vector<1x16xf32> to vector<16x16xf32>
    %29 = arith.addf %26, %28 : vector<16x16xf32>
    %c0_23 = arith.constant 0 : index
    %c0_24 = arith.constant 0 : index
    %30 = vector.load %arg10[%c0_23, %c0_24] : memref<16x16xf32, #tpu.memory_space<vmem>>, vector<16x16xf32>
    tpu.vector_store %arg10[%c0_23, %c0_24], %29 {strides = array<i32>} : memref<16x16xf32, #tpu.memory_space<vmem>>, vector<16x16xf32>,
    return
  }
  func.func @transform_0(%arg0: i32) -> (i32, i32) {
    %c0_i32 = arith.constant 0 : i32
    %c0_i32_0 = arith.constant 0 : i32
    return %arg0, %c0_i32 : i32, i32
  }
  func.func @transform_1(%arg0: i32) -> (i32, i32) {
    %c0_i32 = arith.constant 0 : i32
    %c0_i32_0 = arith.constant 0 : i32
    %c0_i32_1 = arith.constant 0 : i32
    return %c0_i32, %c0_i32_0 : i32, i32
  }
  func.func @transform_2(%arg0: i32) -> (i32, i32) {
    %c0_i32 = arith.constant 0 : i32
    %c0_i32_0 = arith.constant 0 : i32
    %c0_i32_1 = arith.constant 0 : i32
    return %c0_i32, %c0_i32_0 : i32, i32
  }
  func.func @transform_3(%arg0: i32) -> (i32, i32) {
    %c0_i32 = arith.constant 0 : i32
    %c0_i32_0 = arith.constant 0 : i32
    %c0_i32_1 = arith.constant 0 : i32
    return %c0_i32, %c0_i32_0 : i32, i32
  }
  func.func @transform_4(%arg0: i32) -> (i32, i32) {
    %c0_i32 = arith.constant 0 : i32
    %c0_i32_0 = arith.constant 0 : i32
    %c0_i32_1 = arith.constant 0 : i32
    return %c0_i32, %c0_i32_0 : i32, i32
  }
  func.func @transform_5(%arg0: i32) -> (i32, i32) {
    %c0_i32 = arith.constant 0 : i32
    %c0_i32_0 = arith.constant 0 : i32
    %c0_i32_1 = arith.constant 0 : i32
    return %c0_i32, %c0_i32_0 : i32, i32
  }
  func.func @transform_6(%arg0: i32) -> (i32, i32) {
    %c0_i32 = arith.constant 0 : i32
    %c0_i32_0 = arith.constant 0 : i32
    %c0_i32_1 = arith.constant 0 : i32
    return %c0_i32, %c0_i32_0 : i32, i32
  }
  func.func @transform_7(%arg0: i32) -> (i32, i32) {
    %c0_i32 = arith.constant 0 : i32
    %c0_i32_0 = arith.constant 0 : i32
    %c0_i32_1 = arith.constant 0 : i32
    return %c0_i32, %c0_i32_0 : i32, i32
  }
  func.func @transform_8(%arg0: i32) -> (i32, i32) {
    %c0_i32 = arith.constant 0 : i32
    %c0_i32_0 = arith.constant 0 : i32
    %c0_i32_1 = arith.constant 0 : i32
    return %c0_i32, %c0_i32_0 : i32, i32
  }
  func.func @transform_9(%arg0: i32) -> (i32, i32) {
    %c0_i32 = arith.constant 0 : i32
    %c0_i32_0 = arith.constant 0 : i32
    return %arg0, %c0_i32 : i32, i32
  }
}

</mosaic_0001>

<llo_original>
// kernel: tpu_custom_call.1
$region0: #{tpu_custom_call.1}
  #allocation0 [shape = 'u32[]', space=smem, size = 0x4, offset = 0x4, fixed_abs, tag = 'smem constant byte address 0x4 - core index']
  #allocation1 [shape = 'u32[144,128]{1,0:T(1,128)}', space=vmem, size = 0x12000, scoped, tag = 'internal scratch']
  %s0 = inlined_call_operand.hbm [shape: f32[16,128], index: 0, kind: input, shape index: {}]
  %s1 = inlined_call_operand.hbm [shape: f32[8,128], index: 1, kind: input, shape index: {}]
  %s2 = inlined_call_operand.hbm [shape: f32[16,128], index: 2, kind: output, shape index: {}]
  %s3 = sld [smem:[#allocation0]]
  $region49: #{tpu_custom_call.1} parent=0
    _
  %s5 = ssub.s32 1, %s3
  %s6 = scalar_select 0, %s5, %s3
  $region1: #{tpu_custom_call.1} parent=0
    #allocation2 [shape = 'u8[8192]{0}', space=vmem, size = 0x2000, scoped, tag = 'input window, operand 0']
    #allocation3 [shape = 's32[2]{0}', space=sflag, size = 0x8, scoped, tag = 'scoped memory for tpu_custom_call.1']
    #allocation4 [shape = 's32[2]{0}', space=sflag, size = 0x8, scoped, tag = 'scoped memory for tpu_custom_call.1']
    #allocation5 [shape = 'u8[4096]{0}', space=vmem, size = 0x1000, scoped, tag = 'input window, operand 1, single buffered']
    #allocation6 [shape = 's32[1]{0}', space=sflag, size = 0x4, scoped, tag = 'scoped memory for tpu_custom_call.1']
    #allocation7 [shape = 'u8[8192]{0}', space=vmem, size = 0x2000, scoped, tag = 'output window, operand 0']
    %7 = vsyncpa [#allocation3], 0
    %s8 = scalar_lea.sflag [#allocation3], 1
    %9 = vsyncpa %s8, 0
    %10 = vsyncpa [#allocation6], 0
    %11 = vsyncpa [#allocation4], 0
    %s12 = scalar_lea.sflag [#allocation4], 1
    %13 = vsyncpa %s12, 0
    loop: start=0, step=1, limit=4
    $region2: #{tpu_custom_call.1} parent=1 // loop_pre_header
      _
    $region3: #{tpu_custom_call.1} parent=1 // loop_header
      %s15 = sphi 0, %s19
      %p16 = scmp.ge.s32.totalorder %s15, 4
      %s25 = sphi 0, %s27
      %s28 = sphi 0, %s25
      %s29 = sphi 0, %s28
      %s45 = sphi 0, %s29
      %s49 = sphi 0, %s49
      %s51 = sphi 0, %s49
      %s52 = sphi 0, %s51
      %s66 = sphi 0, %s52
      %s72 = sphi 0, %s74
      %s75 = sphi 0, %s72
      %s76 = sphi 0, %s75
      %s92 = sphi 0, %s76
    $region4: #{tpu_custom_call.1} parent=1 // loop_header_branch
      %18 = sbr.rel (%p16) target = $region8
    $region5: #{tpu_custom_call.1} parent=1 // loop_body
      %s20 = ssub.s32 %s15, 1
      %s21 = ssub.s32 %s15, 2
      %s22 = sadd.s32 %s15, 1
      %s23 = ssub.s32 %s15, %s22
      %p24 = scmp.eq.s32.totalorder %s23, 0
      %s26 = sadd.s32 %s25, 1
      %s27 = scalar_select %p24, %s25, %s26
      %p30 = pneg %p24
      %p31 = scmp.eq.s32.totalorder %s15, 1
      %p32 = por %p30, %p31
      %p33 = scmp.ne.s32.totalorder %s25, %s28
      %p34 = scmp.eq.s32.totalorder %s15, 0
      %p35 = por %p33, %p34
      %p36 = scmp.ne.s32.totalorder %s25, %s28
      %p37 = scmp.eq.s32.totalorder %s20, 1
      %p38 = por %p36, %p37
      %p39 = scmp.ne.s32.totalorder %s28, %s29
      %p40 = scmp.eq.s32.totalorder %s20, 0
      %p41 = por %p39, %p40
      %p42 = scmp.ne.s32.totalorder %s28, %s29
      %p43 = scmp.eq.s32.totalorder %s21, 1
      %p44 = por %p42, %p43
      %p46 = scmp.ne.s32.totalorder %s29, %s45
      %p47 = scmp.eq.s32.totalorder %s21, 0
      %p48 = por %p46, %p47
      %s50 = sadd.s32 %s49, 1
      %p53 = scmp.eq.s32.totalorder %s15, 1
      %p54 = scmp.ne.s32.totalorder %s49, %s51
      %p55 = scmp.eq.s32.totalorder %s15, 0
      %p56 = por %p54, %p55
      %p57 = scmp.ne.s32.totalorder %s49, %s51
      %p58 = scmp.eq.s32.totalorder %s20, 1
      %p59 = por %p57, %p58
      %p60 = scmp.ne.s32.totalorder %s51, %s52
      %p61 = scmp.eq.s32.totalorder %s20, 0
      %p62 = por %p60, %p61
      %p63 = scmp.ne.s32.totalorder %s51, %s52
      %p64 = scmp.eq.s32.totalorder %s21, 1
      %p65 = por %p63, %p64
      %p67 = scmp.ne.s32.totalorder %s52, %s66
      %p68 = scmp.eq.s32.totalorder %s21, 0
      %p69 = por %p67, %p68
      %s70 = ssub.s32 %s15, %s22
      %p71 = scmp.eq.s32.totalorder %s70, 0
      %s73 = sadd.s32 %s72, 1
      %s74 = scalar_select %p71, %s72, %s73
      %p77 = pneg %p71
      %p78 = scmp.eq.s32.totalorder %s15, 1
      %p79 = por %p77, %p78
      %p80 = scmp.ne.s32.totalorder %s72, %s75
      %p81 = scmp.eq.s32.totalorder %s15, 0
      %p82 = por %p80, %p81
      %p83 = scmp.ne.s32.totalorder %s72, %s75
      %p84 = scmp.eq.s32.totalorder %s20, 1
      %p85 = por %p83, %p84
      %p86 = scmp.ne.s32.totalorder %s75, %s76
      %p87 = scmp.eq.s32.totalorder %s20, 0
      %p88 = por %p86, %p87
      %p89 = scmp.ne.s32.totalorder %s75, %s76
      %p90 = scmp.eq.s32.totalorder %s21, 1
      %p91 = por %p89, %p90
      %p93 = scmp.ne.s32.totalorder %s76, %s92
      %p94 = scmp.eq.s32.totalorder %s21, 0
      %p95 = por %p93, %p94
      %p96 = scmp.le.s32.totalorder 1, %s15
      %p97 = scmp.lt.s32.totalorder %s15, 3
      %p98 = pnand %p96, %p97
      %p99 = pneg %p98
      // Predicated region
      $region9: #{tpu_custom_call.1} parent=5 // pred_check
        _
      $region10: #{tpu_custom_call.1} parent=5 // pred_check_branch
        %101 = sbr.rel (%p98) target = $region12
      $region11: #{tpu_custom_call.1} parent=5 // pred_region
        %s102 = ssub.s32 %s15, 1
        // Predicated region
        $region13: #{tpu_custom_call.1} parent=11 // pred_check
          %p103 = pneg %p62
        $region14: #{tpu_custom_call.1} parent=11 // pred_check_branch
          %105 = sbr.rel (%p103) target = $region16
        $region15: #{tpu_custom_call.1} parent=11 // pred_region
          %s107 = ssub.s32 128, 128
          %108 = vsyncadd [#allocation6], %s107
          %s110 = sshll.u32 [#allocation5], 4
          %s111 = int_to_ptr.vmem [resolvable:$true] %s110
          %113 = dma.hbm_to_vmem [thread:$0]  %s1, 128, %s111, [#allocation6]
        $region16: #{tpu_custom_call.1} parent=11 // pred_fallthru
          _
      $region12: #{tpu_custom_call.1} parent=5 // pred_fallthru
        _
      %p114 = scmp.lt.s32.totalorder %s15, 2
      // Predicated region
      $region17: #{tpu_custom_call.1} parent=5 // pred_check
        %p115 = pneg %p114
      $region18: #{tpu_custom_call.1} parent=5 // pred_check_branch
        %117 = sbr.rel (%p115) target = $region20
      $region19: #{tpu_custom_call.1} parent=5 // pred_region
        // Predicated region
        $region21: #{tpu_custom_call.1} parent=19 // pred_check
          %p118 = pneg %p35
        $region22: #{tpu_custom_call.1} parent=19 // pred_check_branch
          %120 = sbr.rel (%p118) target = $region24
        $region23: #{tpu_custom_call.1} parent=19 // pred_region
          %s121 = sand.u32 %s25, 1
          %s122 = scalar_lea.sflag [#allocation3], %s121
          %s123 = sand.u32 %s25, 1
          %s124 = smul.addr %s123, 8
          %s125 = scalar_lea.vmem [#allocation2], %s124
          %s127 = ssub.s32 128, 128
          %128 = vsyncadd %s122, %s127
          %s129 = smul.addr %s15, 128
          %s130 = scalar_lea.hbm %s0, %s129
          %s132 = sshll.u32 %s125, 4
          %s133 = int_to_ptr.vmem [resolvable:$true] %s132
          %135 = dma.hbm_to_vmem [thread:$0]  %s130, 128, %s133, %s122
        $region24: #{tpu_custom_call.1} parent=19 // pred_fallthru
          _
      $region20: #{tpu_custom_call.1} parent=5 // pred_fallthru
        _
      %p136 = scmp.le.s32.totalorder 1, %s15
      %p137 = scmp.lt.s32.totalorder %s15, 3
      %p138 = pnand %p136, %p137
      %p139 = pneg %p138
      // Predicated region
      $region25: #{tpu_custom_call.1} parent=5 // pred_check
        _
      $region26: #{tpu_custom_call.1} parent=5 // pred_check_branch
        %141 = sbr.rel (%p138) target = $region28
      $region27: #{tpu_custom_call.1} parent=5 // pred_region
        %s142 = ssub.s32 %s15, 1
        %s143 = sand.u32 %s28, 1
        %s144 = scalar_lea.sflag [#allocation3], %s143
        %s145 = sand.u32 %s28, 1
        %s146 = smul.addr %s145, 8
        %s147 = scalar_lea.vmem [#allocation2], %s146
        // Predicated region
        $region29: #{tpu_custom_call.1} parent=27 // pred_check
          %p148 = pneg %p41
        $region30: #{tpu_custom_call.1} parent=27 // pred_check_branch
          %150 = sbr.rel (%p148) target = $region32
        $region31: #{tpu_custom_call.1} parent=27 // pred_region
          %151 = dma.done %s144, 128
        $region32: #{tpu_custom_call.1} parent=27 // pred_fallthru
          _
        // Predicated region
        $region33: #{tpu_custom_call.1} parent=27 // pred_check
          %p152 = pneg %p62
        $region34: #{tpu_custom_call.1} parent=27 // pred_check_branch
          %154 = sbr.rel (%p152) target = $region36
        $region35: #{tpu_custom_call.1} parent=27 // pred_region
          %155 = dma.done [#allocation6], 128
        $region36: #{tpu_custom_call.1} parent=27 // pred_fallthru
          _
        %s156 = sand.u32 %s28, 1
        %s157 = scalar_lea.sflag [#allocation3], %s156
        %s158 = sand.u32 %s28, 1
        %s159 = smul.addr %s158, 8
        %s160 = scalar_lea.vmem [#allocation2], %s159
        %p161 = pneg %p41
        %p162 = pneg %p38
        %p163 = pneg %p62
        %p164 = pneg %p59
        %p165 = pneg %p88
        %p166 = pneg %p85
        %s167 = sand.u32 %s75, 1
        %s168 = scalar_lea.sflag [#allocation4], %s167
        %s169 = sand.u32 %s75, 1
        %s170 = smul.addr %s169, 8
        %s171 = scalar_lea.vmem [#allocation7], %s170
        %v172 = vld [vmem:[%s147] sm:$0xff]
        %v173 = vld [vmem:[#allocation5] sm:$0xff]
        %v174 = vadd.f32 %v172, %v173
        %175 = vst [vmem:[%s171] sm:$0xff] %v174
        %s176 = sand.u32 %s75, 1
        %s177 = scalar_lea.sflag [#allocation4], %s176
        %s178 = sand.u32 %s75, 1
        %s179 = smul.addr %s178, 8
        %s180 = scalar_lea.vmem [#allocation7], %s179
        // Predicated region
        $region37: #{tpu_custom_call.1} parent=27 // pred_check
          %p181 = pneg %p85
        $region38: #{tpu_custom_call.1} parent=27 // pred_check_branch
          %183 = sbr.rel (%p181) target = $region40
        $region39: #{tpu_custom_call.1} parent=27 // pred_region
          %s185 = ssub.s32 128, 128
          %186 = vsyncadd %s177, %s185
          %s187 = smul.addr %s20, 128
          %s188 = scalar_lea.hbm %s2, %s187
          %s190 = sshll.u32 %s180, 4
          %s191 = int_to_ptr.vmem [resolvable:$true] %s190
          %193 = dma.vmem_to_hbm [thread:$0]  %s191, 128, %s188, %s177
        $region40: #{tpu_custom_call.1} parent=27 // pred_fallthru
          _
      $region28: #{tpu_custom_call.1} parent=5 // pred_fallthru
        _
      %p194 = scmp.le.s32.totalorder 2, %s15
      // Predicated region
      $region41: #{tpu_custom_call.1} parent=5 // pred_check
        %p195 = pneg %p194
      $region42: #{tpu_custom_call.1} parent=5 // pred_check_branch
        %197 = sbr.rel (%p195) target = $region44
      $region43: #{tpu_custom_call.1} parent=5 // pred_region
        %s198 = ssub.s32 %s15, 2
        // Predicated region
        $region45: #{tpu_custom_call.1} parent=43 // pred_check
          %p199 = pneg %p91
        $region46: #{tpu_custom_call.1} parent=43 // pred_check_branch
          %201 = sbr.rel (%p199) target = $region48
        $region47: #{tpu_custom_call.1} parent=43 // pred_region
          %s202 = sand.u32 %s76, 1
          %s203 = scalar_lea.sflag [#allocation4], %s202
          %s204 = sand.u32 %s76, 1
          %s205 = smul.addr %s204, 8
          %s206 = scalar_lea.vmem [#allocation7], %s205
          %207 = dma.done %s203, 128
        $region48: #{tpu_custom_call.1} parent=43 // pred_fallthru
          _
      $region44: #{tpu_custom_call.1} parent=5 // pred_fallthru
        _
    $region6: #{tpu_custom_call.1} parent=1 // loop_footer
      %s19 = sadd.s32 1, %s15
    $region7: #{tpu_custom_call.1} parent=1 // loop_footer_branch
      %14 = sbr.rel target = $region3
    $region8: #{tpu_custom_call.1} parent=1 // loop_exit
      _
    %208 = vsyncpa [#allocation3], 1
    %s209 = scalar_lea.sflag [#allocation3], 1
    %210 = vsyncpa %s209, 1
    %211 = vsyncpa [#allocation6], 1
    %212 = vsyncpa [#allocation4], 1
    %s213 = scalar_lea.sflag [#allocation4], 1
    %214 = vsyncpa %s213, 1

// kernel: _linnet_forward_jit.1
$region0: #{_linnet_forward_jit.1}
  #allocation0 [shape = 'u32[]', space=smem, size = 0x4, offset = 0x4, fixed_abs, tag = 'smem constant byte address 0x4 - core index']
  #allocation1 [shape = 'u32[144,128]{1,0:T(1,128)}', space=vmem, size = 0x12000, scoped, tag = 'internal scratch']
  %s0 = inlined_call_operand.vmem [shape: bf16[16,128], index: 0, kind: input, shape index: {}]
  %s1 = inlined_call_operand.vmem [shape: bf16[128,128], index: 1, kind: input, shape index: {}]
  %s2 = inlined_call_operand.vmem [shape: f32[1,128], index: 2, kind: input, shape index: {}]
  %s3 = inlined_call_operand.hbm [shape: bf16[128,128], index: 3, kind: input, shape index: {}]
  %s4 = inlined_call_operand.vmem [shape: f32[1,128], index: 4, kind: input, shape index: {}]
  %s5 = inlined_call_operand.hbm [shape: bf16[128,128], index: 5, kind: input, shape index: {}]
  %s6 = inlined_call_operand.vmem [shape: f32[1,128], index: 6, kind: input, shape index: {}]
  %s7 = inlined_call_operand.vmem [shape: bf16[128,16], index: 7, kind: input, shape index: {}]
  %s8 = inlined_call_operand.vmem [shape: f32[1,16], index: 8, kind: input, shape index: {}]
  %s9 = inlined_call_operand.vmem [shape: f32[16,16], index: 9, kind: output, shape index: {}]
  %s10 = sld [smem:[#allocation0]]
  $region54: #{_linnet_forward_jit.1} parent=0
    _
  %s12 = ssub.s32 1, %s10
  %s13 = scalar_select 0, %s12, %s10
  $region1: #{_linnet_forward_jit.1} parent=0
    #allocation2 [shape = 'u8[32768]{0}', space=vmem, size = 0x8000, scoped, tag = 'input window, operand 3, single buffered']
    #allocation3 [shape = 's32[1]{0}', space=sflag, size = 0x4, scoped, tag = 'scoped memory for _linnet_forward_jit.1']
    #allocation4 [shape = 'u8[32768]{0}', space=vmem, size = 0x8000, scoped, tag = 'input window, operand 5, single buffered']
    #allocation5 [shape = 's32[1]{0}', space=sflag, size = 0x4, scoped, tag = 'scoped memory for _linnet_forward_jit.1']
    %14 = vsyncpa [#allocation3], 0
    %15 = vsyncpa [#allocation5], 0
    // Predicated region
    $region2: #{_linnet_forward_jit.1} parent=1 // pred_check
      _
    $region3: #{_linnet_forward_jit.1} parent=1 // pred_check_branch
      %17 = sbr.rel (0) target = $region5
    $region4: #{_linnet_forward_jit.1} parent=1 // pred_region
      _
    $region5: #{_linnet_forward_jit.1} parent=1 // pred_fallthru
      _
    // Predicated region
    $region6: #{_linnet_forward_jit.1} parent=1 // pred_check
      _
    $region7: #{_linnet_forward_jit.1} parent=1 // pred_check_branch
      %19 = sbr.rel (0) target = $region9
    $region8: #{_linnet_forward_jit.1} parent=1 // pred_region
      _
    $region9: #{_linnet_forward_jit.1} parent=1 // pred_fallthru
      _
    // Predicated region
    $region10: #{_linnet_forward_jit.1} parent=1 // pred_check
      _
    $region11: #{_linnet_forward_jit.1} parent=1 // pred_check_branch
      %21 = sbr.rel (0) target = $region13
    $region12: #{_linnet_forward_jit.1} parent=1 // pred_region
      _
    $region13: #{_linnet_forward_jit.1} parent=1 // pred_fallthru
      _
    // Predicated region
    $region14: #{_linnet_forward_jit.1} parent=1 // pred_check
      _
    $region15: #{_linnet_forward_jit.1} parent=1 // pred_check_branch
      %23 = sbr.rel (0) target = $region17
    $region16: #{_linnet_forward_jit.1} parent=1 // pred_region
      %s25 = ssub.s32 1024, 1024
      %26 = vsyncadd [#allocation3], %s25
      %s27 = sshll.u32 [#allocation2], 4
      %s28 = int_to_ptr.vmem [resolvable:$true] %s27
      %33 = dma.hbm_to_vmem [thread:$0]  %s3, 1024, %s28, [#allocation3], 64, 64, 4
    $region17: #{_linnet_forward_jit.1} parent=1 // pred_fallthru
      _
    // Predicated region
    $region18: #{_linnet_forward_jit.1} parent=1 // pred_check
      _
    $region19: #{_linnet_forward_jit.1} parent=1 // pred_check_branch
      %35 = sbr.rel (0) target = $region21
    $region20: #{_linnet_forward_jit.1} parent=1 // pred_region
      _
    $region21: #{_linnet_forward_jit.1} parent=1 // pred_fallthru
      _
    // Predicated region
    $region22: #{_linnet_forward_jit.1} parent=1 // pred_check
      _
    $region23: #{_linnet_forward_jit.1} parent=1 // pred_check_branch
      %37 = sbr.rel (0) target = $region25
    $region24: #{_linnet_forward_jit.1} parent=1 // pred_region
      %s39 = ssub.s32 1024, 1024
      %40 = vsyncadd [#allocation5], %s39
      %s41 = sshll.u32 [#allocation4], 4
      %s42 = int_to_ptr.vmem [resolvable:$true] %s41
      %47 = dma.hbm_to_vmem [thread:$0]  %s5, 1024, %s42, [#allocation5], 64, 64, 4
    $region25: #{_linnet_forward_jit.1} parent=1 // pred_fallthru
      _
    // Predicated region
    $region26: #{_linnet_forward_jit.1} parent=1 // pred_check
      _
    $region27: #{_linnet_forward_jit.1} parent=1 // pred_check_branch
      %49 = sbr.rel (0) target = $region29
    $region28: #{_linnet_forward_jit.1} parent=1 // pred_region
      _
    $region29: #{_linnet_forward_jit.1} parent=1 // pred_fallthru
      _
    // Predicated region
    $region30: #{_linnet_forward_jit.1} parent=1 // pred_check
      _
    $region31: #{_linnet_forward_jit.1} parent=1 // pred_check_branch
      %51 = sbr.rel (0) target = $region33
    $region32: #{_linnet_forward_jit.1} parent=1 // pred_region
      _
    $region33: #{_linnet_forward_jit.1} parent=1 // pred_fallthru
      _
    // Predicated region
    $region34: #{_linnet_forward_jit.1} parent=1 // pred_check
      _
    $region35: #{_linnet_forward_jit.1} parent=1 // pred_check_branch
      %53 = sbr.rel (0) target = $region37
    $region36: #{_linnet_forward_jit.1} parent=1 // pred_region
      _
    $region37: #{_linnet_forward_jit.1} parent=1 // pred_fallthru
      _
    // Predicated region
    $region38: #{_linnet_forward_jit.1} parent=1 // pred_check
      _
    $region39: #{_linnet_forward_jit.1} parent=1 // pred_check_branch
      %55 = sbr.rel (0) target = $region41
    $region40: #{_linnet_forward_jit.1} parent=1 // pred_region
      %56 = dma.done [#allocation3], 1024
    $region41: #{_linnet_forward_jit.1} parent=1 // pred_fallthru
      _
    // Predicated region
    $region42: #{_linnet_forward_jit.1} parent=1 // pred_check
      _
    $region43: #{_linnet_forward_jit.1} parent=1 // pred_check_branch
      %58 = sbr.rel (0) target = $region45
    $region44: #{_linnet_forward_jit.1} parent=1 // pred_region
      %59 = dma.done [#allocation5], 1024
    $region45: #{_linnet_forward_jit.1} parent=1 // pred_fallthru
      _
    %v61 = vld [vmem:[%s0] sm:$0xf]
    %v62 = vld [vmem:[%s0 + $0x4] sm:$0xf]
    %v63 = vld [vmem:[%s1] sm:$0xf]
    %v64 = vld [vmem:[%s1 + $0x4] sm:$0xf]
    %v65 = vld [vmem:[%s1 + $0x8] sm:$0xf]
    %v66 = vld [vmem:[%s1 + $0xc] sm:$0xf]
    %v67 = vld [vmem:[%s1 + $0x10] sm:$0xf]
    %v68 = vld [vmem:[%s1 + $0x14] sm:$0xf]
    %v69 = vld [vmem:[%s1 + $0x18] sm:$0xf]
    %v70 = vld [vmem:[%s1 + $0x1c] sm:$0xf]
    %v71 = vld [vmem:[%s1 + $0x20] sm:$0xf]
    %v72 = vld [vmem:[%s1 + $0x24] sm:$0xf]
    %v73 = vld [vmem:[%s1 + $0x28] sm:$0xf]
    %v74 = vld [vmem:[%s1 + $0x2c] sm:$0xf]
    %v75 = vld [vmem:[%s1 + $0x30] sm:$0xf]
    %v76 = vld [vmem:[%s1 + $0x34] sm:$0xf]
    %v77 = vld [vmem:[%s1 + $0x38] sm:$0xf]
    %v78 = vld [vmem:[%s1 + $0x3c] sm:$0xf]
    %v79 = vld [vmem:[%s2] sm:$0x1]
    %v81 = vlaneseq
    %v82 = vshrl.u32 %v81, 7
    %v83 = vsub.s32 0, %v82
    %v84 = vrot.slane %v79, %v83
    %v88 = vunpack.c.l.b16 %v61
    %v89 = vunpack.c.l.b16 %v62
    %v90 = vpack.c.b16 %v89, %v88
    %v108 = vunpack.c.l.b16 %v63
    %v109 = vunpack.c.l.b16 %v64
    %v110 = vunpack.c.l.b16 %v65
    %v111 = vunpack.c.l.b16 %v66
    %v112 = vunpack.c.l.b16 %v67
    %v113 = vunpack.c.l.b16 %v68
    %v114 = vunpack.c.l.b16 %v69
    %v115 = vunpack.c.l.b16 %v70
    %v116 = vunpack.c.l.b16 %v71
    %v117 = vunpack.c.l.b16 %v72
    %v118 = vunpack.c.l.b16 %v73
    %v119 = vunpack.c.l.b16 %v74
    %v120 = vunpack.c.l.b16 %v75
    %v121 = vunpack.c.l.b16 %v76
    %v122 = vunpack.c.l.b16 %v77
    %v123 = vunpack.c.l.b16 %v78
    %v124 = vpack.c.b16 %v109, %v108
    %v125 = vpack.c.b16 %v111, %v110
    %v126 = vpack.c.b16 %v113, %v112
    %v127 = vpack.c.b16 %v115, %v114
    %v128 = vpack.c.b16 %v117, %v116
    %v129 = vpack.c.b16 %v119, %v118
    %v130 = vpack.c.b16 %v121, %v120
    %v131 = vpack.c.b16 %v123, %v122
    %140 = vmatprep.subr.bf16.mxu0 0
    %141 = vmatpush1.bf16.msra.mxu0 %v124
    %142 = vmatprep.subr.bf16.mxu0 0
    %143 = vmatpush1.bf16.msra.mxu0 %v125
    %144 = vmatprep.subr.bf16.mxu0 0
    %145 = vmatpush1.bf16.msra.mxu0 %v126
    %146 = vmatprep.subr.bf16.mxu0 0
    %147 = vmatpush1.bf16.msra.mxu0 %v127
    %148 = vmatprep.subr.bf16.mxu0 0
    %149 = vmatpush1.bf16.msra.mxu0 %v128
    %150 = vmatprep.subr.bf16.mxu0 0
    %151 = vmatpush1.bf16.msra.mxu0 %v129
    %152 = vmatprep.subr.bf16.mxu0 0
    %153 = vmatpush1.bf16.msra.mxu0 %v130
    %154 = vmatprep.subr.bf16.mxu0 0
    %155 = vmatpush1.bf16.msra.mxu0 %v131
    %156 = vmatprep.subr.bf16.mxu0 0
    %157 = vmatpush1.bf16.msra.mxu0 0
    %158 = vmatprep.subr.bf16.mxu0 0
    %159 = vmatpush1.bf16.msra.mxu0 0
    %160 = vmatprep.subr.bf16.mxu0 0
    %161 = vmatpush1.bf16.msra.mxu0 0
    %162 = vmatprep.subr.bf16.mxu0 0
    %163 = vmatpush1.bf16.msra.mxu0 0
    %164 = vmatprep.subr.bf16.mxu0 0
    %165 = vmatpush1.bf16.msra.mxu0 0
    %166 = vmatprep.subr.bf16.mxu0 0
    %167 = vmatpush1.bf16.msra.mxu0 0
    %168 = vmatprep.subr.bf16.mxu0 0
    %169 = vmatpush1.bf16.msra.mxu0 0
    %170 = vmatprep.subr.bf16.mxu0 0
    %171 = vmatpush1.bf16.msra.mxu0 0
    %172 = vmatprep.mubr.bf16.mxu0 0
    %173 = vmatmul.mubr.bf16.gmra.mrb[0].mxu0 %v90
    %v174 = vpop.f32.mrb[0].mxu0
    %v175 = vadd.f32 %v84, %v174
    %v176 = vpop.f32.mrb[0].mxu0
    %v177 = vpop.f32.mrb[0].mxu0
    %v178 = vadd.f32 %v84, %v177
    %v179 = vpop.f32.mrb[0].mxu0
    %180 = vdwg.mxu0
    %v181 = vmax.f32 %v175, 0.0
    %v182 = vmax.f32 %v178, 0.0
    %v183 = vpack.c.bf16 %v182, %v181
    %v184 = vld [vmem:[#allocation2] sm:$0xf]
    %v185 = vld [vmem:[#allocation2 + $0x4] sm:$0xf]
    %v186 = vld [vmem:[#allocation2 + $0x8] sm:$0xf]
    %v187 = vld [vmem:[#allocation2 + $0xc] sm:$0xf]
    %v188 = vld [vmem:[#allocation2 + $0x10] sm:$0xf]
    %v189 = vld [vmem:[#allocation2 + $0x14] sm:$0xf]
    %v190 = vld [vmem:[#allocation2 + $0x18] sm:$0xf]
    %v191 = vld [vmem:[#allocation2 + $0x1c] sm:$0xf]
    %v192 = vld [vmem:[#allocation2 + $0x20] sm:$0xf]
    %v193 = vld [vmem:[#allocation2 + $0x24] sm:$0xf]
    %v194 = vld [vmem:[#allocation2 + $0x28] sm:$0xf]
    %v195 = vld [vmem:[#allocation2 + $0x2c] sm:$0xf]
    %v196 = vld [vmem:[#allocation2 + $0x30] sm:$0xf]
    %v197 = vld [vmem:[#allocation2 + $0x34] sm:$0xf]
    %v198 = vld [vmem:[#allocation2 + $0x38] sm:$0xf]
    %v199 = vld [vmem:[#allocation2 + $0x3c] sm:$0xf]
    %v200 = vld [vmem:[%s4] sm:$0x1]
    %v202 = vlaneseq
    %v203 = vshrl.u32 %v202, 7
    %v204 = vsub.s32 0, %v203
    %v205 = vrot.slane %v200, %v204
    %v223 = vunpack.c.l.b16 %v184
    %v224 = vunpack.c.l.b16 %v185
    %v225 = vunpack.c.l.b16 %v186
    %v226 = vunpack.c.l.b16 %v187
    %v227 = vunpack.c.l.b16 %v188
    %v228 = vunpack.c.l.b16 %v189
    %v229 = vunpack.c.l.b16 %v190
    %v230 = vunpack.c.l.b16 %v191
    %v231 = vunpack.c.l.b16 %v192
    %v232 = vunpack.c.l.b16 %v193
    %v233 = vunpack.c.l.b16 %v194
    %v234 = vunpack.c.l.b16 %v195
    %v235 = vunpack.c.l.b16 %v196
    %v236 = vunpack.c.l.b16 %v197
    %v237 = vunpack.c.l.b16 %v198
    %v238 = vunpack.c.l.b16 %v199
    %v239 = vpack.c.b16 %v224, %v223
    %v240 = vpack.c.b16 %v226, %v225
    %v241 = vpack.c.b16 %v228, %v227
    %v242 = vpack.c.b16 %v230, %v229
    %v243 = vpack.c.b16 %v232, %v231
    %v244 = vpack.c.b16 %v234, %v233
    %v245 = vpack.c.b16 %v236, %v235
    %v246 = vpack.c.b16 %v238, %v237
    %255 = vmatprep.subr.bf16.mxu0 0
    %256 = vmatpush1.bf16.msra.mxu0 %v239
    %257 = vmatprep.subr.bf16.mxu0 0
    %258 = vmatpush1.bf16.msra.mxu0 %v240
    %259 = vmatprep.subr.bf16.mxu0 0
    %260 = vmatpush1.bf16.msra.mxu0 %v241
    %261 = vmatprep.subr.bf16.mxu0 0
    %262 = vmatpush1.bf16.msra.mxu0 %v242
    %263 = vmatprep.subr.bf16.mxu0 0
    %264 = vmatpush1.bf16.msra.mxu0 %v243
    %265 = vmatprep.subr.bf16.mxu0 0
    %266 = vmatpush1.bf16.msra.mxu0 %v244
    %267 = vmatprep.subr.bf16.mxu0 0
    %268 = vmatpush1.bf16.msra.mxu0 %v245
    %269 = vmatprep.subr.bf16.mxu0 0
    %270 = vmatpush1.bf16.msra.mxu0 %v246
    %271 = vmatprep.subr.bf16.mxu0 0
    %272 = vmatpush1.bf16.msra.mxu0 0
    %273 = vmatprep.subr.bf16.mxu0 0
    %274 = vmatpush1.bf16.msra.mxu0 0
    %275 = vmatprep.subr.bf16.mxu0 0
    %276 = vmatpush1.bf16.msra.mxu0 0
    %277 = vmatprep.subr.bf16.mxu0 0
    %278 = vmatpush1.bf16.msra.mxu0 0
    %279 = vmatprep.subr.bf16.mxu0 0
    %280 = vmatpush1.bf16.msra.mxu0 0
    %281 = vmatprep.subr.bf16.mxu0 0
    %282 = vmatpush1.bf16.msra.mxu0 0
    %283 = vmatprep.subr.bf16.mxu0 0
    %284 = vmatpush1.bf16.msra.mxu0 0
    %285 = vmatprep.subr.bf16.mxu0 0
    %286 = vmatpush1.bf16.msra.mxu0 0
    %287 = vmatprep.mubr.bf16.mxu0 0
    %288 = vmatmul.mubr.bf16.gmra.mrb[0].mxu0 %v183
    %v289 = vpop.f32.mrb[0].mxu0
    %v290 = vadd.f32 %v205, %v289
    %v291 = vpop.f32.mrb[0].mxu0
    %v292 = vpop.f32.mrb[0].mxu0
    %v293 = vadd.f32 %v205, %v292
    %v294 = vpop.f32.mrb[0].mxu0
    %295 = vdwg.mxu0
    %v296 = vmax.f32 %v290, 0.0
    %v297 = vmax.f32 %v293, 0.0
    %v298 = vpack.c.bf16 %v297, %v296
    %v299 = vld [vmem:[#allocation4] sm:$0xf]
    %v300 = vld [vmem:[#allocation4 + $0x4] sm:$0xf]
    %v301 = vld [vmem:[#allocation4 + $0x8] sm:$0xf]
    %v302 = vld [vmem:[#allocation4 + $0xc] sm:$0xf]
    %v303 = vld [vmem:[#allocation4 + $0x10] sm:$0xf]
    %v304 = vld [vmem:[#allocation4 + $0x14] sm:$0xf]
    %v305 = vld [vmem:[#allocation4 + $0x18] sm:$0xf]
    %v306 = vld [vmem:[#allocation4 + $0x1c] sm:$0xf]
    %v307 = vld [vmem:[#allocation4 + $0x20] sm:$0xf]
    %v308 = vld [vmem:[#allocation4 + $0x24] sm:$0xf]
    %v309 = vld [vmem:[#allocation4 + $0x28] sm:$0xf]
    %v310 = vld [vmem:[#allocation4 + $0x2c] sm:$0xf]
    %v311 = vld [vmem:[#allocation4 + $0x30] sm:$0xf]
    %v312 = vld [vmem:[#allocation4 + $0x34] sm:$0xf]
    %v313 = vld [vmem:[#allocation4 + $0x38] sm:$0xf]
    %v314 = vld [vmem:[#allocation4 + $0x3c] sm:$0xf]
    %v315 = vld [vmem:[%s6] sm:$0x1]
    %v317 = vlaneseq
    %v318 = vshrl.u32 %v317, 7
    %v319 = vsub.s32 0, %v318
    %v320 = vrot.slane %v315, %v319
    %v338 = vunpack.c.l.b16 %v299
    %v339 = vunpack.c.l.b16 %v300
    %v340 = vunpack.c.l.b16 %v301
    %v341 = vunpack.c.l.b16 %v302
    %v342 = vunpack.c.l.b16 %v303
    %v343 = vunpack.c.l.b16 %v304
    %v344 = vunpack.c.l.b16 %v305
    %v345 = vunpack.c.l.b16 %v306
    %v346 = vunpack.c.l.b16 %v307
    %v347 = vunpack.c.l.b16 %v308
    %v348 = vunpack.c.l.b16 %v309
    %v349 = vunpack.c.l.b16 %v310
    %v350 = vunpack.c.l.b16 %v311
    %v351 = vunpack.c.l.b16 %v312
    %v352 = vunpack.c.l.b16 %v313
    %v353 = vunpack.c.l.b16 %v314
    %v354 = vpack.c.b16 %v339, %v338
    %v355 = vpack.c.b16 %v341, %v340
    %v356 = vpack.c.b16 %v343, %v342
    %v357 = vpack.c.b16 %v345, %v344
    %v358 = vpack.c.b16 %v347, %v346
    %v359 = vpack.c.b16 %v349, %v348
    %v360 = vpack.c.b16 %v351, %v350
    %v361 = vpack.c.b16 %v353, %v352
    %370 = vmatprep.subr.bf16.mxu0 0
    %371 = vmatpush1.bf16.msra.mxu0 %v354
    %372 = vmatprep.subr.bf16.mxu0 0
    %373 = vmatpush1.bf16.msra.mxu0 %v355
    %374 = vmatprep.subr.bf16.mxu0 0
    %375 = vmatpush1.bf16.msra.mxu0 %v356
    %376 = vmatprep.subr.bf16.mxu0 0
    %377 = vmatpush1.bf16.msra.mxu0 %v357
    %378 = vmatprep.subr.bf16.mxu0 0
    %379 = vmatpush1.bf16.msra.mxu0 %v358
    %380 = vmatprep.subr.bf16.mxu0 0
    %381 = vmatpush1.bf16.msra.mxu0 %v359
    %382 = vmatprep.subr.bf16.mxu0 0
    %383 = vmatpush1.bf16.msra.mxu0 %v360
    %384 = vmatprep.subr.bf16.mxu0 0
    %385 = vmatpush1.bf16.msra.mxu0 %v361
    %386 = vmatprep.subr.bf16.mxu0 0
    %387 = vmatpush1.bf16.msra.mxu0 0
    %388 = vmatprep.subr.bf16.mxu0 0
    %389 = vmatpush1.bf16.msra.mxu0 0
    %390 = vmatprep.subr.bf16.mxu0 0
    %391 = vmatpush1.bf16.msra.mxu0 0
    %392 = vmatprep.subr.bf16.mxu0 0
    %393 = vmatpush1.bf16.msra.mxu0 0
    %394 = vmatprep.subr.bf16.mxu0 0
    %395 = vmatpush1.bf16.msra.mxu0 0
    %396 = vmatprep.subr.bf16.mxu0 0
    %397 = vmatpush1.bf16.msra.mxu0 0
    %398 = vmatprep.subr.bf16.mxu0 0
    %399 = vmatpush1.bf16.msra.mxu0 0
    %400 = vmatprep.subr.bf16.mxu0 0
    %401 = vmatpush1.bf16.msra.mxu0 0
    %402 = vmatprep.mubr.bf16.mxu0 0
    %403 = vmatmul.mubr.bf16.gmra.mrb[0].mxu0 %v298
    %v404 = vpop.f32.mrb[0].mxu0
    %v405 = vadd.f32 %v320, %v404
    %v406 = vpop.f32.mrb[0].mxu0
    %v407 = vpop.f32.mrb[0].mxu0
    %v408 = vadd.f32 %v320, %v407
    %v409 = vpop.f32.mrb[0].mxu0
    %410 = vdwg.mxu0
    %v411 = vmax.f32 %v405, 0.0
    %v412 = vmax.f32 %v408, 0.0
    %v413 = vpack.c.bf16 %v412, %v411
    %v414 = vld [vmem:[%s7] sm:$0xf]
    %v415 = vld [vmem:[%s7 + $0x4] sm:$0xf]
    %v416 = vld [vmem:[%s7 + $0x8] sm:$0xf]
    %v417 = vld [vmem:[%s7 + $0xc] sm:$0xf]
    %v418 = vld [vmem:[%s7 + $0x10] sm:$0xf]
    %v419 = vld [vmem:[%s7 + $0x14] sm:$0xf]
    %v420 = vld [vmem:[%s7 + $0x18] sm:$0xf]
    %v421 = vld [vmem:[%s7 + $0x1c] sm:$0xf]
    %v422 = vld [vmem:[%s7 + $0x20] sm:$0xf]
    %v423 = vld [vmem:[%s7 + $0x24] sm:$0xf]
    %v424 = vld [vmem:[%s7 + $0x28] sm:$0xf]
    %v425 = vld [vmem:[%s7 + $0x2c] sm:$0xf]
    %v426 = vld [vmem:[%s7 + $0x30] sm:$0xf]
    %v427 = vld [vmem:[%s7 + $0x34] sm:$0xf]
    %v428 = vld [vmem:[%s7 + $0x38] sm:$0xf]
    %v429 = vld [vmem:[%s7 + $0x3c] sm:$0xf]
    %v430 = vld [vmem:[%s8] sm:$0x1]
    %v432 = vlaneseq
    %v433 = vshrl.u32 %v432, 7
    %v434 = vsub.s32 0, %v433
    %v435 = vrot.slane %v430, %v434
    %v453 = vunpack.c.l.b16 %v414
    %v454 = vunpack.c.l.b16 %v415
    %v455 = vunpack.c.l.b16 %v416
    %v456 = vunpack.c.l.b16 %v417
    %v457 = vunpack.c.l.b16 %v418
    %v458 = vunpack.c.l.b16 %v419
    %v459 = vunpack.c.l.b16 %v420
    %v460 = vunpack.c.l.b16 %v421
    %v461 = vunpack.c.l.b16 %v422
    %v462 = vunpack.c.l.b16 %v423
    %v463 = vunpack.c.l.b16 %v424
    %v464 = vunpack.c.l.b16 %v425
    %v465 = vunpack.c.l.b16 %v426
    %v466 = vunpack.c.l.b16 %v427
    %v467 = vunpack.c.l.b16 %v428
    %v468 = vunpack.c.l.b16 %v429
    %v469 = vpack.c.b16 %v454, %v453
    %v470 = vpack.c.b16 %v456, %v455
    %v471 = vpack.c.b16 %v458, %v457
    %v472 = vpack.c.b16 %v460, %v459
    %v473 = vpack.c.b16 %v462, %v461
    %v474 = vpack.c.b16 %v464, %v463
    %v475 = vpack.c.b16 %v466, %v465
    %v476 = vpack.c.b16 %v468, %v467
    %485 = vmatprep.subr.bf16.mxu0 0
    %486 = vmatpush1.bf16.msra.mxu0 %v469
    %487 = vmatprep.subr.bf16.mxu0 0
    %488 = vmatpush1.bf16.msra.mxu0 %v470
    %489 = vmatprep.subr.bf16.mxu0 0
    %490 = vmatpush1.bf16.msra.mxu0 %v471
    %491 = vmatprep.subr.bf16.mxu0 0
    %492 = vmatpush1.bf16.msra.mxu0 %v472
    %493 = vmatprep.subr.bf16.mxu0 0
    %494 = vmatpush1.bf16.msra.mxu0 %v473
    %495 = vmatprep.subr.bf16.mxu0 0
    %496 = vmatpush1.bf16.msra.mxu0 %v474
    %497 = vmatprep.subr.bf16.mxu0 0
    %498 = vmatpush1.bf16.msra.mxu0 %v475
    %499 = vmatprep.subr.bf16.mxu0 0
    %500 = vmatpush1.bf16.msra.mxu0 %v476
    %501 = vmatprep.subr.bf16.mxu0 0
    %502 = vmatpush1.bf16.msra.mxu0 0
    %503 = vmatprep.subr.bf16.mxu0 0
    %504 = vmatpush1.bf16.msra.mxu0 0
    %505 = vmatprep.subr.bf16.mxu0 0
    %506 = vmatpush1.bf16.msra.mxu0 0
    %507 = vmatprep.subr.bf16.mxu0 0
    %508 = vmatpush1.bf16.msra.mxu0 0
    %509 = vmatprep.subr.bf16.mxu0 0
    %510 = vmatpush1.bf16.msra.mxu0 0
    %511 = vmatprep.subr.bf16.mxu0 0
    %512 = vmatpush1.bf16.msra.mxu0 0
    %513 = vmatprep.subr.bf16.mxu0 0
    %514 = vmatpush1.bf16.msra.mxu0 0
    %515 = vmatprep.subr.bf16.mxu0 0
    %516 = vmatpush1.bf16.msra.mxu0 0
    %517 = vmatprep.mubr.bf16.mxu0 0
    %518 = vmatmul.mubr.bf16.gmra.mrb[0].mxu0 %v413
    %v519 = vpop.f32.mrb[0].mxu0
    %v520 = vadd.f32 %v435, %v519
    %v521 = vpop.f32.mrb[0].mxu0
    %v522 = vpop.f32.mrb[0].mxu0
    %v523 = vadd.f32 %v435, %v522
    %v524 = vpop.f32.mrb[0].mxu0
    %525 = vdwg.mxu0
    %vm526 = vcmask 130048
    %527 = vst.msk [vmem:[%s9] sm:$0xff] %vm526, %v520
    %528 = vst.msk [vmem:[%s9 + $0x8] sm:$0xff] %vm526, %v523
    // Predicated region
    $region46: #{_linnet_forward_jit.1} parent=1 // pred_check
      _
    $region47: #{_linnet_forward_jit.1} parent=1 // pred_check_branch
      %530 = sbr.rel (0) target = $region49
    $region48: #{_linnet_forward_jit.1} parent=1 // pred_region
      _
    $region49: #{_linnet_forward_jit.1} parent=1 // pred_fallthru
      _
    // Predicated region
    $region50: #{_linnet_forward_jit.1} parent=1 // pred_check
      _
    $region51: #{_linnet_forward_jit.1} parent=1 // pred_check_branch
      %532 = sbr.rel (0) target = $region53
    $region52: #{_linnet_forward_jit.1} parent=1 // pred_region
      _
    $region53: #{_linnet_forward_jit.1} parent=1 // pred_fallthru
      _
    %533 = vsyncpa [#allocation3], 1
    %534 = vsyncpa [#allocation5], 1

</llo_original>
